<compile_context>
chip_gen: v7x
topology: tpu7x:2x2x1
jax: 0.10.0
libtpu: 0.0.40
codegen_flags: <defaults>
</compile_context>

<pallas_src>
import jax
import jax.numpy as jnp
from jax.experimental import pallas as pl
from jax.experimental.pallas import tpu as pltpu

EPS = 1e-5
NEG_SLOPE = 0.2
LANE = 128
VMEM_LIMIT = 64 * 1024 * 1024  # safe cap on all of v5e/v6e/v7x; usage stays well below


def _round_up(x, m):
    return (x + m - 1) // m * m


# ---------------------------------------------------------------------------
# Kernel 1: conv-as-matmul (bf16 x bf16 -> f32) fused with per-tile partial
#           sum / sum-of-squares for the batch-norm statistics.
# ---------------------------------------------------------------------------
def conv_mm_stats_kernel(p_ref, w_ref, out_ref, psum_ref, psq_ref):
    z = jnp.dot(p_ref[...], w_ref[...], preferred_element_type=jnp.float32)
    out_ref[...] = z
    s = jnp.sum(z, axis=0, keepdims=True)        # (1, Cp)
    sq = jnp.sum(z * z, axis=0, keepdims=True)   # (1, Cp)
    # Replicate across 8 sublanes so the stats block stays (8,128)-aligned;
    # the wrapper reads row 0 of each chunk.
    psum_ref[...] = jnp.broadcast_to(s[None], psum_ref.shape)
    psq_ref[...] = jnp.broadcast_to(sq[None], psq_ref.shape)


# ---------------------------------------------------------------------------
# Kernel 2: y = z * scale + shift, then LeakyReLU(0.2). scale/shift already
#           fold the whole batch-norm affine (computed once outside the grid).
# ---------------------------------------------------------------------------
def bn_lrelu_kernel(z_ref, scale_ref, shift_ref, out_ref):
    y = z_ref[...] * scale_ref[...] + shift_ref[...]
    out_ref[...] = jnp.where(y >= 0, y, NEG_SLOPE * y)


# ---------------------------------------------------------------------------
# Plain-JAX glue: channels-last im2col for a 4x4 / stride-2 / pad-1 conv.
# K index ordering is (kh, kw, cin); the weight is reordered to match.
# TODO(synk): fold this gather into kernel 1 (manual DMA over an NHWC copy of
# x) to remove the patches round trip through HBM entirely.
# ---------------------------------------------------------------------------
def im2col_4s2p1_nhwc(x_nhwc):
    N, H, W, C = x_nhwc.shape
    Ho, Wo = (H + 2 - 4) // 2 + 1, (W + 2 - 4) // 2 + 1
    xp = jnp.pad(x_nhwc, ((0, 0), (1, 1), (1, 1), (0, 0)))
    taps = [xp[:, kh:kh + 2 * Ho:2, kw:kw + 2 * Wo:2, :]
            for kh in range(4) for kw in range(4)]
    patches = jnp.stack(taps, axis=3)                  # (N, Ho, Wo, 16, C)
    return patches.reshape(N * Ho * Wo, 16 * C), Ho, Wo


def _pick_tile_m(M, Kp, Cp, budget_bytes=40 * 1024 * 1024):
    """Largest power-of-two tile (<=1024 rows) whose double-buffered working
    set fits the VMEM budget (re-derived per call, safe for v7x's 64 MiB)."""
    tm = 1024
    while tm > 128:
        est = 2 * tm * Kp * 2 + 2 * Kp * Cp * 2 + 4 * tm * Cp * 4
        if est <= budget_bytes:
            break
        tm //= 2
    return min(tm, _round_up(M, 128))  # don't over-pad tiny problems


def dcgan_conv_forward(x, weight, bias, gamma, beta):
    """x: (N, Cin, H, W) f32. weight: (Cout, Cin, 4, 4). Returns (N, Cout, H/2, W/2)."""
    del bias  # mathematically cancelled by batch-statistics BatchNorm
    N, Cin, H, W = x.shape
    Cout = weight.shape[0]

    # NCHW -> NHWC once, bf16 for the MXU and halved DMA traffic.
    x_nhwc = jnp.transpose(x, (0, 2, 3, 1)).astype(jnp.bfloat16)
    patches, Ho, Wo = im2col_4s2p1_nhwc(x_nhwc)        # (M, K) bf16
    M, K = patches.shape

    # weight in (kh, kw, cin) x cout order, bf16.
    w2d = jnp.transpose(weight, (2, 3, 1, 0)).reshape(K, Cout).astype(jnp.bfloat16)

    # Lane-dense padding of K / Cout; pad M to the tile.
    Kp = _round_up(K, LANE)
    Cp = _round_up(Cout, LANE)
    tile_m = _pick_tile_m(M, Kp, Cp)
    Mp = _round_up(M, tile_m)
    G = Mp // tile_m

    patches = jnp.pad(patches, ((0, Mp - M), (0, Kp - K)))
    w2d = jnp.pad(w2d, ((0, Kp - K), (0, Cp - Cout)))

    # --- pass 1: conv matmul + fused partial BN statistics ------------------
    conv_out, psum, psq = pl.pallas_call(
        conv_mm_stats_kernel,
        out_shape=(
            jax.ShapeDtypeStruct((Mp, Cp), jnp.float32),
            jax.ShapeDtypeStruct((G, 8, Cp), jnp.float32),
            jax.ShapeDtypeStruct((G, 8, Cp), jnp.float32),
        ),
        grid=(G,),
        in_specs=[
            pl.BlockSpec((tile_m, Kp), lambda i: (i, 0)),
            pl.BlockSpec((Kp, Cp), lambda i: (0, 0)),
        ],
        out_specs=(
            pl.BlockSpec((tile_m, Cp), lambda i: (i, 0)),
            pl.BlockSpec((1, 8, Cp), lambda i: (i, 0, 0)),
            pl.BlockSpec((1, 8, Cp), lambda i: (i, 0, 0)),
        ),
        compiler_params=pltpu.CompilerParams(
            dimension_semantics=("parallel",),
            vmem_limit_bytes=VMEM_LIMIT),
    )(patches, w2d)

    # --- fold BN (batch stats, biased variance) into per-channel scale/shift.
    # Zero-padded rows/channels contribute 0 to the sums (no bias), so we
    # divide by the true M.
    inv_m = 1.0 / float(M)
    sums = psum[:, 0, :].sum(axis=0)                   # (Cp,)
    sqs = psq[:, 0, :].sum(axis=0)                     # (Cp,)
    mean = sums * inv_m
    var = jnp.maximum(sqs * inv_m - mean * mean, 0.0)  # guard cancellation
    scale = jnp.pad(gamma, (0, Cp - Cout)) * jax.lax.rsqrt(var + EPS)
    shift = jnp.pad(beta, (0, Cp - Cout)) - mean * scale
    scale = scale.reshape(1, Cp).astype(jnp.float32)
    shift = shift.reshape(1, Cp).astype(jnp.float32)

    # --- pass 2: scale/shift + LeakyReLU; output aliases conv_out ------------
    out_flat = pl.pallas_call(
        bn_lrelu_kernel,
        out_shape=jax.ShapeDtypeStruct((Mp, Cp), jnp.float32),
        grid=(G,),
        in_specs=[
            pl.BlockSpec((tile_m, Cp), lambda i: (i, 0)),
            pl.BlockSpec((1, Cp), lambda i: (0, 0)),
            pl.BlockSpec((1, Cp), lambda i: (0, 0)),
        ],
        out_specs=pl.BlockSpec((tile_m, Cp), lambda i: (i, 0)),
        input_output_aliases={0: 0},
        compiler_params=pltpu.CompilerParams(
            dimension_semantics=("parallel",),
            vmem_limit_bytes=VMEM_LIMIT),
    )(conv_out, scale, shift)

    # Back to NCHW to match the PyTorch module's output layout.
    # TODO(synk): in a full DCGAN stack keep activations channels-last
    # end-to-end to avoid this transpose.
    out = out_flat[:M, :Cout].reshape(N, Ho, Wo, Cout)
    return jnp.transpose(out, (0, 3, 1, 2))


# ---------------------------------------------------------------------------
# Pure-JAX reference (same semantics as the PyTorch module, training-mode BN)
# ---------------------------------------------------------------------------
def reference_forward(x, weight, bias, gamma, beta):
    z = jax.lax.conv_general_dilated(
        x, weight, window_strides=(2, 2), padding=((1, 1), (1, 1)),
        dimension_numbers=("NCHW", "OIHW", "NCHW"))
    z = z + bias[None, :, None, None]
    mean = z.mean(axis=(0, 2, 3), keepdims=True)
    var = z.var(axis=(0, 2, 3), keepdims=True)     # biased, like PyTorch BN
    y = (z - mean) / jnp.sqrt(var + EPS)
    y = y * gamma[None, :, None, None] + beta[None, :, None, None]
    return jnp.where(y >= 0, y, NEG_SLOPE * y)


if __name__ == "__main__":
    key = jax.random.PRNGKey(0)
    k_x, k_w, k_b, k_g, k_be = jax.random.split(key, 5)

    N, nin, nout, H, W = 2, 4, 8, 16, 16   # Ho=Wo=8, M=128, K=64 (padded to 128)

    x = jax.random.normal(k_x, (N, nin, H, W), dtype=jnp.float32)
    weight = jax.random.normal(k_w, (nout, nin, 4, 4), dtype=jnp.float32) * 0.1
    bias = jax.random.normal(k_b, (nout,), dtype=jnp.float32) * 0.1
    gamma = 1.0 + 0.1 * jax.random.normal(k_g, (nout,), dtype=jnp.float32)
    beta = 0.1 * jax.random.normal(k_be, (nout,), dtype=jnp.float32)

    fwd = jax.jit(dcgan_conv_forward)
    out = jax.block_until_ready(fwd(x, weight, bias, gamma, beta))

    ref = reference_forward(x, weight, bias, gamma, beta)
    assert out.shape == (N, nout, H // 2, W // 2)
    # bf16 MXU operands -> compare at a bf16-appropriate tolerance
    assert jnp.allclose(out, ref, rtol=2e-2, atol=2e-2), \
        f"mismatch vs reference (max abs diff {float(jnp.max(jnp.abs(out - ref)))})"

    print("KERNEL_OK")
</pallas_src>

<mosaic_0001>
module attributes {stable_mosaic.version = 11 : i64} {
  func.func @conv_mm_stats_kernel(%arg0: i32, %arg1: memref<128x128xbf16, #tpu.memory_space<vmem>>, %arg2: memref<128x128xbf16, #tpu.memory_space<vmem>>, %arg3: memref<128x128xf32, #tpu.memory_space<vmem>>, %arg4: memref<1x8x128xf32, #tpu.memory_space<vmem>>, %arg5: memref<1x8x128xf32, #tpu.memory_space<vmem>>) attributes {dimension_semantics = [#tpu.dimension_semantics<parallel>], iteration_bounds = array<i64: 1>, scalar_prefetch = 0 : i64, scratch_operands = 0 : i64, tpu.core_type = #tpu.core_type<tc>, window_params = [{transform_indices = @transform_0, window_bounds = array<i64: 128, 128>}, {pipeline_mode = #tpu.pipeline_mode<synchronous>, transform_indices = @transform_1, window_bounds = array<i64: 128, 128>}, {transform_indices = @transform_2, window_bounds = array<i64: 128, 128>}, {transform_indices = @transform_3, window_bounds = array<i64: 1, 8, 128>}, {transform_indices = @transform_4, window_bounds = array<i64: 1, 8, 128>}]} {
    %c0 = arith.constant 0 : index
    %c0_0 = arith.constant 0 : index
    %0 = vector.load %arg1[%c0, %c0_0] : memref<128x128xbf16, #tpu.memory_space<vmem>>, vector<128x128xbf16>
    %c0_1 = arith.constant 0 : index
    %c0_2 = arith.constant 0 : index
    %1 = vector.load %arg2[%c0_1, %c0_2] : memref<128x128xbf16, #tpu.memory_space<vmem>>, vector<128x128xbf16>
    %cst = arith.constant dense<0.000000e+00> : vector<128x128xf32>
    %2 = tpu.matmul %0, %1, %cst {dimension_numbers = #tpu.dot_dimension_numbers<[1], [0], [0], [1], [0, 0, 1, 1], [], []>} : vector<128x128xbf16>, vector<128x128xbf16>, vector<128x128xf32> -> vector<128x128xf32>
    %c0_3 = arith.constant 0 : index
    %c0_4 = arith.constant 0 : index
    %3 = vector.load %arg3[%c0_3, %c0_4] : memref<128x128xf32, #tpu.memory_space<vmem>>, vector<128x128xf32>
    tpu.vector_store %arg3[%c0_3, %c0_4], %2 {strides = array<i32>} : memref<128x128xf32, #tpu.memory_space<vmem>>, vector<128x128xf32>,
    %cst_5 = arith.constant dense<0.000000e+00> : vector<128xf32>
    %4 = vector.multi_reduction <add>, %2, %cst_5 [0] : vector<128x128xf32> to vector<128xf32>
    %5 = vector.shape_cast %4 : vector<128xf32> to vector<1x128xf32>
    %6 = arith.mulf %2, %2 : vector<128x128xf32>
    %cst_6 = arith.constant dense<0.000000e+00> : vector<128xf32>
    %7 = vector.multi_reduction <add>, %6, %cst_6 [0] : vector<128x128xf32> to vector<128xf32>
    %8 = vector.shape_cast %7 : vector<128xf32> to vector<1x128xf32>
    %9 = vector.shape_cast %5 : vector<1x128xf32> to vector<1x1x128xf32>
    %10 = vector.shape_cast %9 : vector<1x1x128xf32> to vector<1x1x128xf32>
    %11 = vector.broadcast %10 : vector<1x1x128xf32> to vector<1x8x128xf32>
    %c0_7 = arith.constant 0 : index
    %c0_8 = arith.constant 0 : index
    %c0_9 = arith.constant 0 : index
    %12 = vector.load %arg4[%c0_7, %c0_8, %c0_9] : memref<1x8x128xf32, #tpu.memory_space<vmem>>, vector<1x8x128xf32>
    tpu.vector_store %arg4[%c0_7, %c0_8, %c0_9], %11 {strides = array<i32>} : memref<1x8x128xf32, #tpu.memory_space<vmem>>, vector<1x8x128xf32>,
    %13 = vector.shape_cast %8 : vector<1x128xf32> to vector<1x1x128xf32>
    %14 = vector.shape_cast %13 : vector<1x1x128xf32> to vector<1x1x128xf32>
    %15 = vector.broadcast %14 : vector<1x1x128xf32> to vector<1x8x128xf32>
    %c0_10 = arith.constant 0 : index
    %c0_11 = arith.constant 0 : index
    %c0_12 = arith.constant 0 : index
    %16 = vector.load %arg5[%c0_10, %c0_11, %c0_12] : memref<1x8x128xf32, #tpu.memory_space<vmem>>, vector<1x8x128xf32>
    tpu.vector_store %arg5[%c0_10, %c0_11, %c0_12], %15 {strides = array<i32>} : memref<1x8x128xf32, #tpu.memory_space<vmem>>, vector<1x8x128xf32>,
    return
  }
  func.func @transform_0(%arg0: i32) -> (i32, i32) {
    %c0_i32 = arith.constant 0 : i32
    %c0_i32_0 = arith.constant 0 : i32
    return %arg0, %c0_i32 : i32, i32
  }
  func.func @transform_1(%arg0: i32) -> (i32, i32) {
    %c0_i32 = arith.constant 0 : i32
    %c0_i32_0 = arith.constant 0 : i32
    %c0_i32_1 = arith.constant 0 : i32
    return %c0_i32, %c0_i32_0 : i32, i32
  }
  func.func @transform_2(%arg0: i32) -> (i32, i32) {
    %c0_i32 = arith.constant 0 : i32
    %c0_i32_0 = arith.constant 0 : i32
    return %arg0, %c0_i32 : i32, i32
  }
  func.func @transform_3(%arg0: i32) -> (i32, i32, i32) {
    %c0_i32 = arith.constant 0 : i32
    %c0_i32_0 = arith.constant 0 : i32
    %c0_i32_1 = arith.constant 0 : i32
    return %arg0, %c0_i32, %c0_i32_0 : i32, i32, i32
  }
  func.func @transform_4(%arg0: i32) -> (i32, i32, i32) {
    %c0_i32 = arith.constant 0 : i32
    %c0_i32_0 = arith.constant 0 : i32
    %c0_i32_1 = arith.constant 0 : i32
    return %arg0, %c0_i32, %c0_i32_0 : i32, i32, i32
  }
}

module attributes {stable_mosaic.version = 11 : i64} {
  func.func @bn_lrelu_kernel(%arg0: i32, %arg1: memref<128x128xf32, #tpu.memory_space<vmem>>, %arg2: memref<1x128xf32, #tpu.memory_space<vmem>>, %arg3: memref<1x128xf32, #tpu.memory_space<vmem>>, %arg4: memref<128x128xf32, #tpu.memory_space<vmem>>) attributes {dimension_semantics = [#tpu.dimension_semantics<parallel>], iteration_bounds = array<i64: 1>, scalar_prefetch = 0 : i64, scratch_operands = 0 : i64, tpu.core_type = #tpu.core_type<tc>, window_params = [{transform_indices = @transform_0, window_bounds = array<i64: 128, 128>}, {pipeline_mode = #tpu.pipeline_mode<synchronous>, transform_indices = @transform_1, window_bounds = array<i64: 1, 128>}, {pipeline_mode = #tpu.pipeline_mode<synchronous>, transform_indices = @transform_2, window_bounds = array<i64: 1, 128>}, {transform_indices = @transform_3, window_bounds = array<i64: 128, 128>}]} {
    %c0 = arith.constant 0 : index
    %c0_0 = arith.constant 0 : index
    %0 = vector.load %arg1[%c0, %c0_0] : memref<128x128xf32, #tpu.memory_space<vmem>>, vector<128x128xf32>
    %c0_1 = arith.constant 0 : index
    %c0_2 = arith.constant 0 : index
    %1 = vector.load %arg2[%c0_1, %c0_2] : memref<1x128xf32, #tpu.memory_space<vmem>>, vector<1x128xf32>
    %2 = vector.broadcast %1 : vector<1x128xf32> to vector<128x128xf32>
    %3 = arith.mulf %0, %2 : vector<128x128xf32>
    %c0_3 = arith.constant 0 : index
    %c0_4 = arith.constant 0 : index
    %4 = vector.load %arg3[%c0_3, %c0_4] : memref<1x128xf32, #tpu.memory_space<vmem>>, vector<1x128xf32>
    %5 = vector.broadcast %4 : vector<1x128xf32> to vector<128x128xf32>
    %6 = arith.addf %3, %5 : vector<128x128xf32>
    %cst = arith.constant 0.000000e+00 : f32
    %7 = vector.broadcast %cst : f32 to vector<128x128xf32>
    %8 = arith.cmpf oge, %6, %7 : vector<128x128xf32>
    %cst_5 = arith.constant 2.000000e-01 : f32
    %9 = vector.broadcast %cst_5 : f32 to vector<128x128xf32>
    %10 = arith.mulf %9, %6 : vector<128x128xf32>
    %11 = arith.select %8, %6, %10 : vector<128x128xi1>, vector<128x128xf32>
    %c0_6 = arith.constant 0 : index
    %c0_7 = arith.constant 0 : index
    %12 = vector.load %arg4[%c0_6, %c0_7] : memref<128x128xf32, #tpu.memory_space<vmem>>, vector<128x128xf32>
    tpu.vector_store %arg4[%c0_6, %c0_7], %11 {strides = array<i32>} : memref<128x128xf32, #tpu.memory_space<vmem>>, vector<128x128xf32>,
    return
  }
  func.func @transform_0(%arg0: i32) -> (i32, i32) {
    %c0_i32 = arith.constant 0 : i32
    %c0_i32_0 = arith.constant 0 : i32
    return %arg0, %c0_i32 : i32, i32
  }
  func.func @transform_1(%arg0: i32) -> (i32, i32) {
    %c0_i32 = arith.constant 0 : i32
    %c0_i32_0 = arith.constant 0 : i32
    %c0_i32_1 = arith.constant 0 : i32
    return %c0_i32, %c0_i32_0 : i32, i32
  }
  func.func @transform_2(%arg0: i32) -> (i32, i32) {
    %c0_i32 = arith.constant 0 : i32
    %c0_i32_0 = arith.constant 0 : i32
    %c0_i32_1 = arith.constant 0 : i32
    return %c0_i32, %c0_i32_0 : i32, i32
  }
  func.func @transform_3(%arg0: i32) -> (i32, i32) {
    %c0_i32 = arith.constant 0 : i32
    %c0_i32_0 = arith.constant 0 : i32
    return %arg0, %c0_i32 : i32, i32
  }
}

</mosaic_0001>

<llo_original>
// kernel: dcgan_conv_forward.3
$region0: #{dcgan_conv_forward.3}
  #allocation0 [shape = 'u32[]', space=smem, size = 0x4, offset = 0x4, fixed_abs, tag = 'smem constant byte address 0x4 - core index']
  #allocation1 [shape = 'u32[144,128]{1,0:T(1,128)}', space=vmem, size = 0x12000, scoped, tag = 'internal scratch']
  %s0 = inlined_call_operand.hbm [shape: f32[128,128], index: 0, kind: input, shape index: {}, may-alias: {0,3}]
  %s1 = inlined_call_operand.hbm [shape: f32[1,128], index: 1, kind: input, shape index: {}]
  %s2 = inlined_call_operand.hbm [shape: f32[1,128], index: 2, kind: input, shape index: {}]
  %s3 = inlined_call_operand.hbm [shape: f32[128,128], index: 3, kind: output, shape index: {}, may-alias: {0,3}]
  %s4 = sld [smem:[#allocation0]]
  $region34: #{dcgan_conv_forward.3} parent=0
    _
  %s6 = ssub.s32 1, %s4
  %s7 = scalar_select 0, %s6, %s4
  $region1: #{dcgan_conv_forward.3} parent=0
    #allocation2 [shape = 'u8[65536]{0}', space=vmem, size = 0x10000, scoped, tag = 'input window, operand 0, single buffered']
    #allocation3 [shape = 's32[1]{0}', space=sflag, size = 0x4, scoped, tag = 'scoped memory for dcgan_conv_forward.3']
    #allocation4 [shape = 's32[1]{0}', space=sflag, size = 0x4, scoped, tag = 'scoped memory for dcgan_conv_forward.3']
    #allocation5 [shape = 'u8[512]{0}', space=vmem, size = 0x400, scoped, tag = 'input window, operand 1, single buffered']
    #allocation6 [shape = 's32[1]{0}', space=sflag, size = 0x4, scoped, tag = 'scoped memory for dcgan_conv_forward.3']
    #allocation7 [shape = 'u8[512]{0}', space=vmem, size = 0x400, scoped, tag = 'input window, operand 2, single buffered']
    #allocation8 [shape = 'u8[65536]{0}', space=vmem, size = 0x10000, scoped, tag = 'output window, operand 0, single buffered']
    %8 = vsyncpa [#allocation3], 0
    %9 = vsyncpa [#allocation6], 0
    %10 = vsyncpa [#allocation4], 0
    // Predicated region
    $region2: #{dcgan_conv_forward.3} parent=1 // pred_check
      _
    $region3: #{dcgan_conv_forward.3} parent=1 // pred_check_branch
      %12 = sbr.rel (0) target = $region5
    $region4: #{dcgan_conv_forward.3} parent=1 // pred_region
      %s14 = ssub.s32 2048, 2048
      %15 = vsyncadd [#allocation3], %s14
      %s16 = sshll.u32 [#allocation2], 4
      %s17 = int_to_ptr.vmem [resolvable:$true] %s16
      %22 = dma.hbm_to_vmem [thread:$0]  %s0, 2048, %s17, [#allocation3], 128, 128, 8
    $region5: #{dcgan_conv_forward.3} parent=1 // pred_fallthru
      _
    // Predicated region
    $region6: #{dcgan_conv_forward.3} parent=1 // pred_check
      _
    $region7: #{dcgan_conv_forward.3} parent=1 // pred_check_branch
      %24 = sbr.rel (0) target = $region9
    $region8: #{dcgan_conv_forward.3} parent=1 // pred_region
      %s26 = ssub.s32 16, 16
      %27 = vsyncadd [#allocation6], %s26
      %s29 = sshll.u32 [#allocation5], 4
      %s30 = int_to_ptr.vmem [resolvable:$true] %s29
      %32 = dma.hbm_to_vmem [thread:$0]  %s1, 16, %s30, [#allocation6]
    $region9: #{dcgan_conv_forward.3} parent=1 // pred_fallthru
      _
    // Predicated region
    $region10: #{dcgan_conv_forward.3} parent=1 // pred_check
      _
    $region11: #{dcgan_conv_forward.3} parent=1 // pred_check_branch
      %34 = sbr.rel (0) target = $region13
    $region12: #{dcgan_conv_forward.3} parent=1 // pred_region
      %s36 = ssub.s32 16, 16
      %37 = vsyncadd [#allocation6], %s36
      %s39 = sshll.u32 [#allocation7], 4
      %s40 = int_to_ptr.vmem [resolvable:$true] %s39
      %42 = dma.hbm_to_vmem [thread:$0]  %s2, 16, %s40, [#allocation6]
    $region13: #{dcgan_conv_forward.3} parent=1 // pred_fallthru
      _
    // Predicated region
    $region14: #{dcgan_conv_forward.3} parent=1 // pred_check
      _
    $region15: #{dcgan_conv_forward.3} parent=1 // pred_check_branch
      %44 = sbr.rel (0) target = $region17
    $region16: #{dcgan_conv_forward.3} parent=1 // pred_region
      %45 = dma.done [#allocation3], 2048
    $region17: #{dcgan_conv_forward.3} parent=1 // pred_fallthru
      _
    // Predicated region
    $region18: #{dcgan_conv_forward.3} parent=1 // pred_check
      _
    $region19: #{dcgan_conv_forward.3} parent=1 // pred_check_branch
      %47 = sbr.rel (0) target = $region21
    $region20: #{dcgan_conv_forward.3} parent=1 // pred_region
      %48 = dma.done [#allocation6], 16
    $region21: #{dcgan_conv_forward.3} parent=1 // pred_fallthru
      _
    // Predicated region
    $region22: #{dcgan_conv_forward.3} parent=1 // pred_check
      _
    $region23: #{dcgan_conv_forward.3} parent=1 // pred_check_branch
      %50 = sbr.rel (0) target = $region25
    $region24: #{dcgan_conv_forward.3} parent=1 // pred_region
      %51 = dma.done [#allocation6], 16
    $region25: #{dcgan_conv_forward.3} parent=1 // pred_fallthru
      _
    %v52 = vld [vmem:[#allocation2] sm:$0xff]
    %v53 = vld [vmem:[#allocation2 + $0x8] sm:$0xff]
    %v54 = vld [vmem:[#allocation2 + $0x10] sm:$0xff]
    %v55 = vld [vmem:[#allocation2 + $0x18] sm:$0xff]
    %v56 = vld [vmem:[#allocation2 + $0x20] sm:$0xff]
    %v57 = vld [vmem:[#allocation2 + $0x28] sm:$0xff]
    %v58 = vld [vmem:[#allocation2 + $0x30] sm:$0xff]
    %v59 = vld [vmem:[#allocation2 + $0x38] sm:$0xff]
    %v60 = vld [vmem:[#allocation2 + $0x40] sm:$0xff]
    %v61 = vld [vmem:[#allocation2 + $0x48] sm:$0xff]
    %v62 = vld [vmem:[#allocation2 + $0x50] sm:$0xff]
    %v63 = vld [vmem:[#allocation2 + $0x58] sm:$0xff]
    %v64 = vld [vmem:[#allocation2 + $0x60] sm:$0xff]
    %v65 = vld [vmem:[#allocation2 + $0x68] sm:$0xff]
    %v66 = vld [vmem:[#allocation2 + $0x70] sm:$0xff]
    %v67 = vld [vmem:[#allocation2 + $0x78] sm:$0xff]
    %v68 = vld [vmem:[#allocation5] sm:$0x1]
    %v70 = vlaneseq
    %v71 = vshrl.u32 %v70, 7
    %v72 = vsub.s32 0, %v71
    %v73 = vrot.slane %v68, %v72
    %v75 = vmul.f32 %v52, %v73
    %v76 = vmul.f32 %v53, %v73
    %v77 = vmul.f32 %v54, %v73
    %v78 = vmul.f32 %v55, %v73
    %v79 = vmul.f32 %v56, %v73
    %v80 = vmul.f32 %v57, %v73
    %v81 = vmul.f32 %v58, %v73
    %v82 = vmul.f32 %v59, %v73
    %v83 = vmul.f32 %v60, %v73
    %v84 = vmul.f32 %v61, %v73
    %v85 = vmul.f32 %v62, %v73
    %v86 = vmul.f32 %v63, %v73
    %v87 = vmul.f32 %v64, %v73
    %v88 = vmul.f32 %v65, %v73
    %v89 = vmul.f32 %v66, %v73
    %v90 = vmul.f32 %v67, %v73
    %v91 = vld [vmem:[#allocation7] sm:$0x1]
    %v93 = vlaneseq
    %v94 = vshrl.u32 %v93, 7
    %v95 = vsub.s32 0, %v94
    %v96 = vrot.slane %v91, %v95
    %v98 = vadd.f32 %v75, %v96
    %v99 = vadd.f32 %v76, %v96
    %v100 = vadd.f32 %v77, %v96
    %v101 = vadd.f32 %v78, %v96
    %v102 = vadd.f32 %v79, %v96
    %v103 = vadd.f32 %v80, %v96
    %v104 = vadd.f32 %v81, %v96
    %v105 = vadd.f32 %v82, %v96
    %v106 = vadd.f32 %v83, %v96
    %v107 = vadd.f32 %v84, %v96
    %v108 = vadd.f32 %v85, %v96
    %v109 = vadd.f32 %v86, %v96
    %v110 = vadd.f32 %v87, %v96
    %v111 = vadd.f32 %v88, %v96
    %v112 = vadd.f32 %v89, %v96
    %v113 = vadd.f32 %v90, %v96
    %vm114 = vcmp.ge.f32.partialorder %v98, 0.0
    %vm115 = vcmp.ge.f32.partialorder %v99, 0.0
    %vm116 = vcmp.ge.f32.partialorder %v100, 0.0
    %vm117 = vcmp.ge.f32.partialorder %v101, 0.0
    %vm118 = vcmp.ge.f32.partialorder %v102, 0.0
    %vm119 = vcmp.ge.f32.partialorder %v103, 0.0
    %vm120 = vcmp.ge.f32.partialorder %v104, 0.0
    %vm121 = vcmp.ge.f32.partialorder %v105, 0.0
    %vm122 = vcmp.ge.f32.partialorder %v106, 0.0
    %vm123 = vcmp.ge.f32.partialorder %v107, 0.0
    %vm124 = vcmp.ge.f32.partialorder %v108, 0.0
    %vm125 = vcmp.ge.f32.partialorder %v109, 0.0
    %vm126 = vcmp.ge.f32.partialorder %v110, 0.0
    %vm127 = vcmp.ge.f32.partialorder %v111, 0.0
    %vm128 = vcmp.ge.f32.partialorder %v112, 0.0
    %vm129 = vcmp.ge.f32.partialorder %v113, 0.0
    %v130 = vmul.f32 %v98, 0.2
    %v131 = vmul.f32 %v99, 0.2
    %v132 = vmul.f32 %v100, 0.2
    %v133 = vmul.f32 %v101, 0.2
    %v134 = vmul.f32 %v102, 0.2
    %v135 = vmul.f32 %v103, 0.2
    %v136 = vmul.f32 %v104, 0.2
    %v137 = vmul.f32 %v105, 0.2
    %v138 = vmul.f32 %v106, 0.2
    %v139 = vmul.f32 %v107, 0.2
    %v140 = vmul.f32 %v108, 0.2
    %v141 = vmul.f32 %v109, 0.2
    %v142 = vmul.f32 %v110, 0.2
    %v143 = vmul.f32 %v111, 0.2
    %v144 = vmul.f32 %v112, 0.2
    %v145 = vmul.f32 %v113, 0.2
    %v146 = vsel %vm114, %v98, %v130
    %v147 = vsel %vm115, %v99, %v131
    %v148 = vsel %vm116, %v100, %v132
    %v149 = vsel %vm117, %v101, %v133
    %v150 = vsel %vm118, %v102, %v134
    %v151 = vsel %vm119, %v103, %v135
    %v152 = vsel %vm120, %v104, %v136
    %v153 = vsel %vm121, %v105, %v137
    %v154 = vsel %vm122, %v106, %v138
    %v155 = vsel %vm123, %v107, %v139
    %v156 = vsel %vm124, %v108, %v140
    %v157 = vsel %vm125, %v109, %v141
    %v158 = vsel %vm126, %v110, %v142
    %v159 = vsel %vm127, %v111, %v143
    %v160 = vsel %vm128, %v112, %v144
    %v161 = vsel %vm129, %v113, %v145
    %162 = vst [vmem:[#allocation8] sm:$0xff] %v146
    %163 = vst [vmem:[#allocation8 + $0x8] sm:$0xff] %v147
    %164 = vst [vmem:[#allocation8 + $0x10] sm:$0xff] %v148
    %165 = vst [vmem:[#allocation8 + $0x18] sm:$0xff] %v149
    %166 = vst [vmem:[#allocation8 + $0x20] sm:$0xff] %v150
    %167 = vst [vmem:[#allocation8 + $0x28] sm:$0xff] %v151
    %168 = vst [vmem:[#allocation8 + $0x30] sm:$0xff] %v152
    %169 = vst [vmem:[#allocation8 + $0x38] sm:$0xff] %v153
    %170 = vst [vmem:[#allocation8 + $0x40] sm:$0xff] %v154
    %171 = vst [vmem:[#allocation8 + $0x48] sm:$0xff] %v155
    %172 = vst [vmem:[#allocation8 + $0x50] sm:$0xff] %v156
    %173 = vst [vmem:[#allocation8 + $0x58] sm:$0xff] %v157
    %174 = vst [vmem:[#allocation8 + $0x60] sm:$0xff] %v158
    %175 = vst [vmem:[#allocation8 + $0x68] sm:$0xff] %v159
    %176 = vst [vmem:[#allocation8 + $0x70] sm:$0xff] %v160
    %177 = vst [vmem:[#allocation8 + $0x78] sm:$0xff] %v161
    // Predicated region
    $region26: #{dcgan_conv_forward.3} parent=1 // pred_check
      _
    $region27: #{dcgan_conv_forward.3} parent=1 // pred_check_branch
      %179 = sbr.rel (0) target = $region29
    $region28: #{dcgan_conv_forward.3} parent=1 // pred_region
      %s181 = ssub.s32 2048, 2048
      %182 = vsyncadd [#allocation4], %s181
      %s183 = sshll.u32 [#allocation8], 4
      %s184 = int_to_ptr.vmem [resolvable:$true] %s183
      %189 = dma.vmem_to_hbm [thread:$0]  %s184, 2048, %s3, [#allocation4], 128, 128, 8
    $region29: #{dcgan_conv_forward.3} parent=1 // pred_fallthru
      _
    // Predicated region
    $region30: #{dcgan_conv_forward.3} parent=1 // pred_check
      _
    $region31: #{dcgan_conv_forward.3} parent=1 // pred_check_branch
      %191 = sbr.rel (0) target = $region33
    $region32: #{dcgan_conv_forward.3} parent=1 // pred_region
      %192 = dma.done [#allocation4], 2048
    $region33: #{dcgan_conv_forward.3} parent=1 // pred_fallthru
      _
    %193 = vsyncpa [#allocation3], 1
    %194 = vsyncpa [#allocation6], 1
    %195 = vsyncpa [#allocation4], 1

// kernel: dcgan_conv_forward.2
$region0: #{dcgan_conv_forward.2}
  #allocation0 [shape = 'u32[]', space=smem, size = 0x4, offset = 0x4, fixed_abs, tag = 'smem constant byte address 0x4 - core index']
  #allocation1 [shape = 'u32[144,128]{1,0:T(1,128)}', space=vmem, size = 0x12000, scoped, tag = 'internal scratch']
  %s0 = inlined_call_operand.hbm [shape: bf16[128,128], index: 0, kind: input, shape index: {}]
  %s1 = inlined_call_operand.hbm [shape: bf16[128,128], index: 1, kind: input, shape index: {}]
  %s2 = inlined_call_operand.hbm [shape: f32[128,128], index: 2, kind: output, shape index: {0}]
  %s3 = inlined_call_operand.hbm [shape: f32[1,8,128], index: 3, kind: output, shape index: {1}]
  %s4 = inlined_call_operand.hbm [shape: f32[1,8,128], index: 4, kind: output, shape index: {2}]
  %5 = xla_tuple %s2, %s3, %s4
  %s6 = sld [smem:[#allocation0]]
  $region42: #{dcgan_conv_forward.2} parent=0
    _
  %s8 = ssub.s32 1, %s6
  %s9 = scalar_select 0, %s8, %s6
  $region1: #{dcgan_conv_forward.2} parent=0
    #allocation2 [shape = 'u8[32768]{0}', space=vmem, size = 0x8000, scoped, tag = 'input window, operand 0, single buffered']
    #allocation3 [shape = 's32[1]{0}', space=sflag, size = 0x4, scoped, tag = 'scoped memory for dcgan_conv_forward.2']
    #allocation4 [shape = 's32[1]{0}', space=sflag, size = 0x4, scoped, tag = 'scoped memory for dcgan_conv_forward.2']
    #allocation5 [shape = 'u8[32768]{0}', space=vmem, size = 0x8000, scoped, tag = 'input window, operand 1, single buffered']
    #allocation6 [shape = 's32[1]{0}', space=sflag, size = 0x4, scoped, tag = 'scoped memory for dcgan_conv_forward.2']
    #allocation7 [shape = 'u8[65536]{0}', space=vmem, size = 0x10000, scoped, tag = 'output window, operand 0, single buffered']
    #allocation8 [shape = 'u8[4096]{0}', space=vmem, size = 0x1000, scoped, tag = 'output window, operand 1, single buffered']
    #allocation9 [shape = 's32[1]{0}', space=sflag, size = 0x4, scoped, tag = 'scoped memory for dcgan_conv_forward.2']
    #allocation10 [shape = 'u8[4096]{0}', space=vmem, size = 0x1000, scoped, tag = 'output window, operand 2, single buffered']
    %10 = vsyncpa [#allocation3], 0
    %11 = vsyncpa [#allocation6], 0
    %12 = vsyncpa [#allocation4], 0
    %13 = vsyncpa [#allocation9], 0
    // Predicated region
    $region2: #{dcgan_conv_forward.2} parent=1 // pred_check
      _
    $region3: #{dcgan_conv_forward.2} parent=1 // pred_check_branch
      %15 = sbr.rel (0) target = $region5
    $region4: #{dcgan_conv_forward.2} parent=1 // pred_region
      %s17 = ssub.s32 1024, 1024
      %18 = vsyncadd [#allocation3], %s17
      %s19 = sshll.u32 [#allocation2], 4
      %s20 = int_to_ptr.vmem [resolvable:$true] %s19
      %25 = dma.hbm_to_vmem [thread:$0]  %s0, 1024, %s20, [#allocation3], 64, 64, 4
    $region5: #{dcgan_conv_forward.2} parent=1 // pred_fallthru
      _
    // Predicated region
    $region6: #{dcgan_conv_forward.2} parent=1 // pred_check
      _
    $region7: #{dcgan_conv_forward.2} parent=1 // pred_check_branch
      %27 = sbr.rel (0) target = $region9
    $region8: #{dcgan_conv_forward.2} parent=1 // pred_region
      %s29 = ssub.s32 1024, 1024
      %30 = vsyncadd [#allocation6], %s29
      %s31 = sshll.u32 [#allocation5], 4
      %s32 = int_to_ptr.vmem [resolvable:$true] %s31
      %37 = dma.hbm_to_vmem [thread:$0]  %s1, 1024, %s32, [#allocation6], 64, 64, 4
    $region9: #{dcgan_conv_forward.2} parent=1 // pred_fallthru
      _
    // Predicated region
    $region10: #{dcgan_conv_forward.2} parent=1 // pred_check
      _
    $region11: #{dcgan_conv_forward.2} parent=1 // pred_check_branch
      %39 = sbr.rel (0) target = $region13
    $region12: #{dcgan_conv_forward.2} parent=1 // pred_region
      %40 = dma.done [#allocation3], 1024
    $region13: #{dcgan_conv_forward.2} parent=1 // pred_fallthru
      _
    // Predicated region
    $region14: #{dcgan_conv_forward.2} parent=1 // pred_check
      _
    $region15: #{dcgan_conv_forward.2} parent=1 // pred_check_branch
      %42 = sbr.rel (0) target = $region17
    $region16: #{dcgan_conv_forward.2} parent=1 // pred_region
      %43 = dma.done [#allocation6], 1024
    $region17: #{dcgan_conv_forward.2} parent=1 // pred_fallthru
      _
    %v45 = vld [vmem:[#allocation2] sm:$0xf]
    %v46 = vld [vmem:[#allocation2 + $0x4] sm:$0xf]
    %v47 = vld [vmem:[#allocation2 + $0x8] sm:$0xf]
    %v48 = vld [vmem:[#allocation2 + $0xc] sm:$0xf]
    %v49 = vld [vmem:[#allocation2 + $0x10] sm:$0xf]
    %v50 = vld [vmem:[#allocation2 + $0x14] sm:$0xf]
    %v51 = vld [vmem:[#allocation2 + $0x18] sm:$0xf]
    %v52 = vld [vmem:[#allocation2 + $0x1c] sm:$0xf]
    %v53 = vld [vmem:[#allocation2 + $0x20] sm:$0xf]
    %v54 = vld [vmem:[#allocation2 + $0x24] sm:$0xf]
    %v55 = vld [vmem:[#allocation2 + $0x28] sm:$0xf]
    %v56 = vld [vmem:[#allocation2 + $0x2c] sm:$0xf]
    %v57 = vld [vmem:[#allocation2 + $0x30] sm:$0xf]
    %v58 = vld [vmem:[#allocation2 + $0x34] sm:$0xf]
    %v59 = vld [vmem:[#allocation2 + $0x38] sm:$0xf]
    %v60 = vld [vmem:[#allocation2 + $0x3c] sm:$0xf]
    %v61 = vld [vmem:[#allocation5] sm:$0xf]
    %v62 = vld [vmem:[#allocation5 + $0x4] sm:$0xf]
    %v63 = vld [vmem:[#allocation5 + $0x8] sm:$0xf]
    %v64 = vld [vmem:[#allocation5 + $0xc] sm:$0xf]
    %v65 = vld [vmem:[#allocation5 + $0x10] sm:$0xf]
    %v66 = vld [vmem:[#allocation5 + $0x14] sm:$0xf]
    %v67 = vld [vmem:[#allocation5 + $0x18] sm:$0xf]
    %v68 = vld [vmem:[#allocation5 + $0x1c] sm:$0xf]
    %v69 = vld [vmem:[#allocation5 + $0x20] sm:$0xf]
    %v70 = vld [vmem:[#allocation5 + $0x24] sm:$0xf]
    %v71 = vld [vmem:[#allocation5 + $0x28] sm:$0xf]
    %v72 = vld [vmem:[#allocation5 + $0x2c] sm:$0xf]
    %v73 = vld [vmem:[#allocation5 + $0x30] sm:$0xf]
    %v74 = vld [vmem:[#allocation5 + $0x34] sm:$0xf]
    %v75 = vld [vmem:[#allocation5 + $0x38] sm:$0xf]
    %v76 = vld [vmem:[#allocation5 + $0x3c] sm:$0xf]
    %v93 = vunpack.c.l.b16 %v45
    %v94 = vunpack.c.l.b16 %v46
    %v95 = vunpack.c.l.b16 %v47
    %v96 = vunpack.c.l.b16 %v48
    %v97 = vunpack.c.l.b16 %v49
    %v98 = vunpack.c.l.b16 %v50
    %v99 = vunpack.c.l.b16 %v51
    %v100 = vunpack.c.l.b16 %v52
    %v101 = vunpack.c.l.b16 %v53
    %v102 = vunpack.c.l.b16 %v54
    %v103 = vunpack.c.l.b16 %v55
    %v104 = vunpack.c.l.b16 %v56
    %v105 = vunpack.c.l.b16 %v57
    %v106 = vunpack.c.l.b16 %v58
    %v107 = vunpack.c.l.b16 %v59
    %v108 = vunpack.c.l.b16 %v60
    %v109 = vpack.c.b16 %v94, %v93
    %v110 = vpack.c.b16 %v96, %v95
    %v111 = vpack.c.b16 %v98, %v97
    %v112 = vpack.c.b16 %v100, %v99
    %v113 = vpack.c.b16 %v102, %v101
    %v114 = vpack.c.b16 %v104, %v103
    %v115 = vpack.c.b16 %v106, %v105
    %v116 = vpack.c.b16 %v108, %v107
    %v141 = vunpack.c.l.b16 %v61
    %v142 = vunpack.c.l.b16 %v62
    %v143 = vunpack.c.l.b16 %v63
    %v144 = vunpack.c.l.b16 %v64
    %v145 = vunpack.c.l.b16 %v65
    %v146 = vunpack.c.l.b16 %v66
    %v147 = vunpack.c.l.b16 %v67
    %v148 = vunpack.c.l.b16 %v68
    %v149 = vunpack.c.l.b16 %v69
    %v150 = vunpack.c.l.b16 %v70
    %v151 = vunpack.c.l.b16 %v71
    %v152 = vunpack.c.l.b16 %v72
    %v153 = vunpack.c.l.b16 %v73
    %v154 = vunpack.c.l.b16 %v74
    %v155 = vunpack.c.l.b16 %v75
    %v156 = vunpack.c.l.b16 %v76
    %v157 = vpack.c.b16 %v142, %v141
    %v158 = vpack.c.b16 %v144, %v143
    %v159 = vpack.c.b16 %v146, %v145
    %v160 = vpack.c.b16 %v148, %v147
    %v161 = vpack.c.b16 %v150, %v149
    %v162 = vpack.c.b16 %v152, %v151
    %v163 = vpack.c.b16 %v154, %v153
    %v164 = vpack.c.b16 %v156, %v155
    %173 = vmatprep.subr.bf16.mxu0 0
    %174 = vmatpush1.bf16.msra.mxu0 %v157
    %175 = vmatprep.subr.bf16.mxu0 0
    %176 = vmatpush1.bf16.msra.mxu0 %v158
    %177 = vmatprep.subr.bf16.mxu0 0
    %178 = vmatpush1.bf16.msra.mxu0 %v159
    %179 = vmatprep.subr.bf16.mxu0 0
    %180 = vmatpush1.bf16.msra.mxu0 %v160
    %181 = vmatprep.subr.bf16.mxu0 0
    %182 = vmatpush1.bf16.msra.mxu0 %v161
    %183 = vmatprep.subr.bf16.mxu0 0
    %184 = vmatpush1.bf16.msra.mxu0 %v162
    %185 = vmatprep.subr.bf16.mxu0 0
    %186 = vmatpush1.bf16.msra.mxu0 %v163
    %187 = vmatprep.subr.bf16.mxu0 0
    %188 = vmatpush1.bf16.msra.mxu0 %v164
    %189 = vmatprep.subr.bf16.mxu0 0
    %190 = vmatpush1.bf16.msra.mxu0 0
    %191 = vmatprep.subr.bf16.mxu0 0
    %192 = vmatpush1.bf16.msra.mxu0 0
    %193 = vmatprep.subr.bf16.mxu0 0
    %194 = vmatpush1.bf16.msra.mxu0 0
    %195 = vmatprep.subr.bf16.mxu0 0
    %196 = vmatpush1.bf16.msra.mxu0 0
    %197 = vmatprep.subr.bf16.mxu0 0
    %198 = vmatpush1.bf16.msra.mxu0 0
    %199 = vmatprep.subr.bf16.mxu0 0
    %200 = vmatpush1.bf16.msra.mxu0 0
    %201 = vmatprep.subr.bf16.mxu0 0
    %202 = vmatpush1.bf16.msra.mxu0 0
    %203 = vmatprep.subr.bf16.mxu0 0
    %204 = vmatpush1.bf16.msra.mxu0 0
    %205 = vmatprep.mubr.bf16.mxu0 0
    %206 = vmatmul.mubr.bf16.gmra.mrb[0].mxu0 %v109
    %v207 = vpop.f32.mrb[0].mxu0
    %v208 = vadd.f32 0.0, %v207
    %v209 = vpop.f32.mrb[0].mxu0
    %v210 = vpop.f32.mrb[0].mxu0
    %v211 = vadd.f32 0.0, %v210
    %v212 = vpop.f32.mrb[0].mxu0
    %213 = vmatprep.mubr.bf16.mxu0 0
    %214 = vmatmul.mubr.bf16.gmra.mrb[0].mxu0 %v110
    %v215 = vpop.f32.mrb[0].mxu0
    %v216 = vadd.f32 0.0, %v215
    %v217 = vpop.f32.mrb[0].mxu0
    %v218 = vpop.f32.mrb[0].mxu0
    %v219 = vadd.f32 0.0, %v218
    %v220 = vpop.f32.mrb[0].mxu0
    %221 = vmatprep.mubr.bf16.mxu0 0
    %222 = vmatmul.mubr.bf16.gmra.mrb[0].mxu0 %v111
    %v223 = vpop.f32.mrb[0].mxu0
    %v224 = vadd.f32 0.0, %v223
    %v225 = vpop.f32.mrb[0].mxu0
    %v226 = vpop.f32.mrb[0].mxu0
    %v227 = vadd.f32 0.0, %v226
    %v228 = vpop.f32.mrb[0].mxu0
    %229 = vmatprep.mubr.bf16.mxu0 0
    %230 = vmatmul.mubr.bf16.gmra.mrb[0].mxu0 %v112
    %v231 = vpop.f32.mrb[0].mxu0
    %v232 = vadd.f32 0.0, %v231
    %v233 = vpop.f32.mrb[0].mxu0
    %v234 = vpop.f32.mrb[0].mxu0
    %v235 = vadd.f32 0.0, %v234
    %v236 = vpop.f32.mrb[0].mxu0
    %237 = vmatprep.mubr.bf16.mxu0 0
    %238 = vmatmul.mubr.bf16.gmra.mrb[0].mxu0 %v113
    %v239 = vpop.f32.mrb[0].mxu0
    %v240 = vadd.f32 0.0, %v239
    %v241 = vpop.f32.mrb[0].mxu0
    %v242 = vpop.f32.mrb[0].mxu0
    %v243 = vadd.f32 0.0, %v242
    %v244 = vpop.f32.mrb[0].mxu0
    %245 = vmatprep.mubr.bf16.mxu0 0
    %246 = vmatmul.mubr.bf16.gmra.mrb[0].mxu0 %v114
    %v247 = vpop.f32.mrb[0].mxu0
    %v248 = vadd.f32 0.0, %v247
    %v249 = vpop.f32.mrb[0].mxu0
    %v250 = vpop.f32.mrb[0].mxu0
    %v251 = vadd.f32 0.0, %v250
    %v252 = vpop.f32.mrb[0].mxu0
    %253 = vmatprep.mubr.bf16.mxu0 0
    %254 = vmatmul.mubr.bf16.gmra.mrb[0].mxu0 %v115
    %v255 = vpop.f32.mrb[0].mxu0
    %v256 = vadd.f32 0.0, %v255
    %v257 = vpop.f32.mrb[0].mxu0
    %v258 = vpop.f32.mrb[0].mxu0
    %v259 = vadd.f32 0.0, %v258
    %v260 = vpop.f32.mrb[0].mxu0
    %261 = vmatprep.mubr.bf16.mxu0 0
    %262 = vmatmul.mubr.bf16.gmra.mrb[0].mxu0 %v116
    %v263 = vpop.f32.mrb[0].mxu0
    %v264 = vadd.f32 0.0, %v263
    %v265 = vpop.f32.mrb[0].mxu0
    %v266 = vpop.f32.mrb[0].mxu0
    %v267 = vadd.f32 0.0, %v266
    %v268 = vpop.f32.mrb[0].mxu0
    %269 = vdwg.mxu0
    %270 = vst [vmem:[#allocation7] sm:$0xff] %v208
    %271 = vst [vmem:[#allocation7 + $0x8] sm:$0xff] %v211
    %272 = vst [vmem:[#allocation7 + $0x10] sm:$0xff] %v216
    %273 = vst [vmem:[#allocation7 + $0x18] sm:$0xff] %v219
    %274 = vst [vmem:[#allocation7 + $0x20] sm:$0xff] %v224
    %275 = vst [vmem:[#allocation7 + $0x28] sm:$0xff] %v227
    %276 = vst [vmem:[#allocation7 + $0x30] sm:$0xff] %v232
    %277 = vst [vmem:[#allocation7 + $0x38] sm:$0xff] %v235
    %278 = vst [vmem:[#allocation7 + $0x40] sm:$0xff] %v240
    %279 = vst [vmem:[#allocation7 + $0x48] sm:$0xff] %v243
    %280 = vst [vmem:[#allocation7 + $0x50] sm:$0xff] %v248
    %281 = vst [vmem:[#allocation7 + $0x58] sm:$0xff] %v251
    %282 = vst [vmem:[#allocation7 + $0x60] sm:$0xff] %v256
    %283 = vst [vmem:[#allocation7 + $0x68] sm:$0xff] %v259
    %284 = vst [vmem:[#allocation7 + $0x70] sm:$0xff] %v264
    %285 = vst [vmem:[#allocation7 + $0x78] sm:$0xff] %v267
    %v286 = vadd.f32 %v208, %v211
    %v287 = vadd.f32 %v286, %v216
    %v288 = vadd.f32 %v287, %v219
    %v289 = vadd.f32 %v288, %v224
    %v290 = vadd.f32 %v289, %v227
    %v291 = vadd.f32 %v290, %v232
    %v292 = vadd.f32 %v291, %v235
    %v293 = vadd.f32 %v292, %v240
    %v294 = vadd.f32 %v293, %v243
    %v295 = vadd.f32 %v294, %v248
    %v296 = vadd.f32 %v295, %v251
    %v297 = vadd.f32 %v296, %v256
    %v298 = vadd.f32 %v297, %v259
    %v299 = vadd.f32 %v298, %v264
    %v300 = vadd.f32 %v299, %v267
    %v301 = vrot.slane %v300, 4
    %v302 = vadd.f32 %v300, %v301
    %v303 = vrot.slane %v302, 2
    %v304 = vadd.f32 %v302, %v303
    %v305 = vrot.slane %v304, 1
    %v306 = vadd.f32 %v304, %v305
    %v307 = vmul.f32 %v208, %v208
    %v308 = vmul.f32 %v211, %v211
    %v309 = vmul.f32 %v216, %v216
    %v310 = vmul.f32 %v219, %v219
    %v311 = vmul.f32 %v224, %v224
    %v312 = vmul.f32 %v227, %v227
    %v313 = vmul.f32 %v232, %v232
    %v314 = vmul.f32 %v235, %v235
    %v315 = vmul.f32 %v240, %v240
    %v316 = vmul.f32 %v243, %v243
    %v317 = vmul.f32 %v248, %v248
    %v318 = vmul.f32 %v251, %v251
    %v319 = vmul.f32 %v256, %v256
    %v320 = vmul.f32 %v259, %v259
    %v321 = vmul.f32 %v264, %v264
    %v322 = vmul.f32 %v267, %v267
    %v323 = vadd.f32 %v307, %v308
    %v324 = vadd.f32 %v323, %v309
    %v325 = vadd.f32 %v324, %v310
    %v326 = vadd.f32 %v325, %v311
    %v327 = vadd.f32 %v326, %v312
    %v328 = vadd.f32 %v327, %v313
    %v329 = vadd.f32 %v328, %v314
    %v330 = vadd.f32 %v329, %v315
    %v331 = vadd.f32 %v330, %v316
    %v332 = vadd.f32 %v331, %v317
    %v333 = vadd.f32 %v332, %v318
    %v334 = vadd.f32 %v333, %v319
    %v335 = vadd.f32 %v334, %v320
    %v336 = vadd.f32 %v335, %v321
    %v337 = vadd.f32 %v336, %v322
    %v338 = vrot.slane %v337, 4
    %v339 = vadd.f32 %v337, %v338
    %v340 = vrot.slane %v339, 2
    %v341 = vadd.f32 %v339, %v340
    %v342 = vrot.slane %v341, 1
    %v343 = vadd.f32 %v341, %v342
    %344 = vst [vmem:[#allocation8] sm:$0xff] %v306
    %345 = vst [vmem:[#allocation10] sm:$0xff] %v343
    // Predicated region
    $region18: #{dcgan_conv_forward.2} parent=1 // pred_check
      _
    $region19: #{dcgan_conv_forward.2} parent=1 // pred_check_branch
      %347 = sbr.rel (0) target = $region21
    $region20: #{dcgan_conv_forward.2} parent=1 // pred_region
      %s349 = ssub.s32 2048, 2048
      %350 = vsyncadd [#allocation4], %s349
      %s351 = sshll.u32 [#allocation7], 4
      %s352 = int_to_ptr.vmem [resolvable:$true] %s351
      %357 = dma.vmem_to_hbm [thread:$0]  %s352, 2048, %s2, [#allocation4], 128, 128, 8
    $region21: #{dcgan_conv_forward.2} parent=1 // pred_fallthru
      _
    // Predicated region
    $region22: #{dcgan_conv_forward.2} parent=1 // pred_check
      _
    $region23: #{dcgan_conv_forward.2} parent=1 // pred_check_branch
      %359 = sbr.rel (0) target = $region25
    $region24: #{dcgan_conv_forward.2} parent=1 // pred_region
      %s361 = ssub.s32 128, 128
      %362 = vsyncadd [#allocation9], %s361
      %s364 = sshll.u32 [#allocation8], 4
      %s365 = int_to_ptr.vmem [resolvable:$true] %s364
      %367 = dma.vmem_to_hbm [thread:$0]  %s365, 128, %s3, [#allocation9]
    $region25: #{dcgan_conv_forward.2} parent=1 // pred_fallthru
      _
    // Predicated region
    $region26: #{dcgan_conv_forward.2} parent=1 // pred_check
      _
    $region27: #{dcgan_conv_forward.2} parent=1 // pred_check_branch
      %369 = sbr.rel (0) target = $region29
    $region28: #{dcgan_conv_forward.2} parent=1 // pred_region
      %s371 = ssub.s32 128, 128
      %372 = vsyncadd [#allocation9], %s371
      %s374 = sshll.u32 [#allocation10], 4
      %s375 = int_to_ptr.vmem [resolvable:$true] %s374
      %377 = dma.vmem_to_hbm [thread:$0]  %s375, 128, %s4, [#allocation9]
    $region29: #{dcgan_conv_forward.2} parent=1 // pred_fallthru
      _
    // Predicated region
    $region30: #{dcgan_conv_forward.2} parent=1 // pred_check
      _
    $region31: #{dcgan_conv_forward.2} parent=1 // pred_check_branch
      %379 = sbr.rel (0) target = $region33
    $region32: #{dcgan_conv_forward.2} parent=1 // pred_region
      %380 = dma.done [#allocation4], 2048
    $region33: #{dcgan_conv_forward.2} parent=1 // pred_fallthru
      _
    // Predicated region
    $region34: #{dcgan_conv_forward.2} parent=1 // pred_check
      _
    $region35: #{dcgan_conv_forward.2} parent=1 // pred_check_branch
      %382 = sbr.rel (0) target = $region37
    $region36: #{dcgan_conv_forward.2} parent=1 // pred_region
      %383 = dma.done [#allocation9], 128
    $region37: #{dcgan_conv_forward.2} parent=1 // pred_fallthru
      _
    // Predicated region
    $region38: #{dcgan_conv_forward.2} parent=1 // pred_check
      _
    $region39: #{dcgan_conv_forward.2} parent=1 // pred_check_branch
      %385 = sbr.rel (0) target = $region41
    $region40: #{dcgan_conv_forward.2} parent=1 // pred_region
      %386 = dma.done [#allocation9], 128
    $region41: #{dcgan_conv_forward.2} parent=1 // pred_fallthru
      _
    %387 = vsyncpa [#allocation3], 1
    %388 = vsyncpa [#allocation6], 1
    %389 = vsyncpa [#allocation4], 1
    %390 = vsyncpa [#allocation9], 1

</llo_original>
